<compile_context>
chip_gen: v7x
topology: tpu7x:2x2x1
jax: 0.10.0
libtpu: 0.0.40
codegen_flags: <defaults>
</compile_context>

<pallas_src>
import math
import functools

import jax
import jax.numpy as jnp
from jax import lax
from jax.experimental import pallas as pl
from jax.experimental.pallas import tpu as pltpu


def _spatio_conv_kernel(lkT_ref, w_ref, b_ref, x_ref, o_ref, *,
                        C, TT, N, mxu_channel_mix, matmul_dtype):
    # lkT_ref : VMEM (N, N)       Lk^T                 (lkT[m, n] = Lk[n, m])
    # w_ref   : SMEM (C, C) f32 (small C) or VMEM (C, C) matmul dtype (large C)
    #           w[o, i] = sum_k theta[i, o, k]
    # b_ref   : VMEM (C, 1, 1)    per-output-channel bias, f32
    # x_ref   : VMEM (C, TT, N)   input block, caller dtype
    # o_ref   : VMEM (C, TT, N)   output block, caller dtype
    x3 = x_ref[...]                                              # (C, TT, N)

    # ---- node (graph) mixing on the MXU -------------------------------------
    # (C, TT, N) -> (C*TT, N) merges leading dims into the sublane axis only, so
    # it is layout-preserving (no relayout).
    x_rows = x3.reshape(C * TT, N)
    if x_rows.dtype != matmul_dtype:
        x_rows = x_rows.astype(matmul_dtype)                     # opt-in cast only
    xc3 = lax.dot_general(
        x_rows, lkT_ref[...],
        dimension_numbers=(((1,), (0,)), ((), ())),
        preferred_element_type=jnp.float32,
    ).reshape(C, TT, N)                                          # f32

    x3f = x3.astype(jnp.float32)                                 # residual (no-op for f32 x)
    b3 = b_ref[...]                                              # (C, 1, 1) f32

    if not mxu_channel_mix:
        # ---- channel mixing as C*C broadcast-FMAs on the VPU (small C) -------
        # Stays in the natural (C, TT, N) layout: no lane-dense relayout, and the
        # bias + residual + ReLU epilogue fuses into the same pass per channel.
        for o in range(C):
            acc = x3f[o] + b3[o]                                 # (TT, N) f32
            for i in range(C):
                acc = acc + w_ref[o, i] * xc3[i]
            o_ref[o] = jnp.maximum(acc, 0.0).astype(o_ref.dtype)
    else:
        # ---- channel mixing on the MXU (large C) ------------------------------
        # TODO(synk): this path pays two lane-dense relayouts; only taken when the
        # (C, C) @ (C, TT*N) matmul is large enough (C > 32) to dominate them.
        xc_cm = xc3.reshape(C, TT * N).astype(matmul_dtype)
        xgc = lax.dot_general(
            w_ref[...], xc_cm,
            dimension_numbers=(((1,), (0,)), ((), ())),
            preferred_element_type=jnp.float32,
        ).reshape(C, TT, N)
        o_ref[...] = jnp.maximum(xgc + b3 + x3f, 0.0).astype(o_ref.dtype)


def _tile_footprint(C, t, N, x_bytes, out_bytes, mm_bytes):
    tile = C * t * N
    return (2 * tile * x_bytes + 2 * tile * out_bytes   # double-buffered in/out blocks
            + 4 * tile * 4                              # f32 temporaries in the body
            + 2 * N * N * mm_bytes + 2 * C * C * 4      # Lk^T / weight buffers
            + (64 << 10))                               # misc slack


def _pick_time_tile(B, C, T, N, x_bytes, out_bytes, mm_bytes, budget_bytes):
    """Largest time-tile (multiple of 8 dividing T, or T itself) whose per-step VMEM
    footprint fits the budget while keeping >= 2 grid steps (pipelining + megacore)."""
    cands = sorted({t for t in range(8, T + 1, 8) if T % t == 0} | {T}, reverse=True)
    for t in cands:
        if (_tile_footprint(C, t, N, x_bytes, out_bytes, mm_bytes) <= budget_bytes
                and B * (T // t) >= 2):
            return t
    feasible = [t for t in cands if B * (T // t) >= 2]
    return feasible[-1] if feasible else cands[-1]


def spatio_conv_layer(x, Lk, theta, b, *, matmul_dtype=None, t_tile=None):
    """Forward pass of ASTGCN spatio_conv_layer.

    x: (B, C, T, N); Lk: (N, N); theta: (C, C, KS); b: (1, C, 1, 1).
    matmul_dtype: dtype of the MXU operands (default: x.dtype).  Pass jnp.bfloat16 to
      speed up the node-mix matmul for f32 activations (accumulation stays f32).
    """
    B, C, T, N = x.shape
    mm_dtype = x.dtype if matmul_dtype is None else jax.dtypes.canonicalize_dtype(matmul_dtype)
    x_bytes = x.dtype.itemsize
    out_bytes = x.dtype.itemsize
    mm_bytes = mm_dtype.itemsize

    # VMEM-budget-aware tiling (v7x: 64 MiB per TC; v6e/v5e: 128 MiB).
    try:
        vmem_cap = int(pltpu.get_tpu_info().vmem_capacity_bytes)
    except Exception:
        vmem_cap = 64 << 20   # conservative (v7x) fallback
    budget = vmem_cap // 2

    if t_tile is None:
        t_tile = _pick_time_tile(B, C, T, N, x_bytes, out_bytes, mm_bytes, budget)
    else:
        assert T % t_tile == 0, "t_tile must divide T (no ragged-tail handling)"
    footprint = _tile_footprint(C, t_tile, N, x_bytes, out_bytes, mm_bytes)
    vmem_limit = int(min(int(vmem_cap * 0.9), max(int(footprint * 1.3), 32 << 20)))

    # TODO(synk): when C * t_tile < 128 the node-mix matmul underfills the MXU rows;
    # folding a small batch tile into the block would help, but is omitted here.

    # Tiny parameter prep (no whole-tensor HBM transposes of x).
    lkT = jnp.asarray(Lk).T.astype(mm_dtype)                              # (N, N)
    w = jnp.transpose(jnp.sum(jnp.asarray(theta, jnp.float32), axis=-1))  # (C_out, C_in)
    b_col = jnp.asarray(b, jnp.float32).reshape(C, 1, 1)

    mxu_channel_mix = C > 32
    if mxu_channel_mix:
        w_in = w.astype(mm_dtype)
        w_spec = pl.BlockSpec((C, C), lambda bb, j: (0, 0))               # VMEM matmul operand
    else:
        w_in = w                                                          # f32 scalars in SMEM
        w_spec = pl.BlockSpec(memory_space=pltpu.MemorySpace.SMEM)

    kernel = functools.partial(_spatio_conv_kernel, C=C, TT=t_tile, N=N,
                               mxu_channel_mix=mxu_channel_mix, matmul_dtype=mm_dtype)

    grid = (B, T // t_tile)
    flops = 2 * B * C * T * N * N + 2 * B * C * C * T * N
    bytes_accessed = B * C * T * N * (x_bytes + out_bytes) + N * N * mm_bytes + C * C * 4 + C * 4

    out = pl.pallas_call(
        kernel,
        out_shape=jax.ShapeDtypeStruct((B, C, T, N), x.dtype),
        grid=grid,
        in_specs=[
            pl.BlockSpec((N, N), lambda bb, j: (0, 0)),                        # Lk^T (resident)
            w_spec,                                                            # channel-mix weights
            pl.BlockSpec((C, 1, 1), lambda bb, j: (0, 0, 0)),                  # bias (resident)
            pl.BlockSpec((None, C, t_tile, N), lambda bb, j: (bb, 0, j, 0)),   # x block
        ],
        out_specs=pl.BlockSpec((None, C, t_tile, N), lambda bb, j: (bb, 0, j, 0)),
        compiler_params=pltpu.CompilerParams(
            dimension_semantics=("parallel", "parallel"),
            vmem_limit_bytes=vmem_limit),
        cost_estimate=pl.CostEstimate(
            flops=flops, transcendentals=0, bytes_accessed=bytes_accessed),
    )(lkT, w_in, b_col, x)
    return out


def spatio_conv_ref(x, Lk, theta, b):
    """Pure-JAX reference with identical semantics to the PyTorch forward."""
    hi = jax.lax.Precision.HIGHEST
    x_c = jnp.einsum('nm,bitm->bitn', Lk, x, precision=hi)
    x_gc = jnp.einsum('iok,bitn->botn', theta, x_c, precision=hi) + b
    return jax.nn.relu(x_gc + x)


if __name__ == "__main__":
    B, C, T, N, KS = 2, 4, 8, 16, 3

    key = jax.random.PRNGKey(0)
    k1, k2, k3, k4 = jax.random.split(key, 4)

    x = jax.random.normal(k1, (B, C, T, N), dtype=jnp.float32)
    Lk = jax.random.normal(k2, (N, N), dtype=jnp.float32) / math.sqrt(N)

    # Deterministic parameter init mimicking reset_parameters():
    # kaiming_uniform_(theta, a=sqrt(5)) with fan_in = C*KS; b ~ U(-1/sqrt(fan_in), +...).
    fan_in = C * KS
    bound = 1.0 / math.sqrt(fan_in)
    theta = jax.random.uniform(k3, (C, C, KS), jnp.float32, -bound, bound)
    b = jax.random.uniform(k4, (1, C, 1, 1), jnp.float32, -bound, bound)

    ref = spatio_conv_ref(x, Lk, theta, b)

    # f32 activations (f32 MXU operands, f32 accumulation).
    out = jax.block_until_ready(spatio_conv_layer(x, Lk, theta, b))
    assert out.shape == (B, C, T, N) and out.dtype == x.dtype
    max_err = float(jnp.max(jnp.abs(out - ref)))
    assert jnp.allclose(out, ref, atol=1e-4, rtol=1e-4), f"f32 max |err| = {max_err}"

    # bf16 activations in / bf16 out (halves HBM traffic); f32 accumulation + epilogue.
    out_bf16 = jax.block_until_ready(spatio_conv_layer(x.astype(jnp.bfloat16), Lk, theta, b))
    assert out_bf16.dtype == jnp.bfloat16
    max_err_bf16 = float(jnp.max(jnp.abs(out_bf16.astype(jnp.float32) - ref)))
    assert max_err_bf16 < 1.5e-1, f"bf16 max |err| = {max_err_bf16}"

    print("KERNEL_OK")
</pallas_src>

<mosaic_0001>
module attributes {stable_mosaic.version = 11 : i64} {
  func.func @_spatio_conv_kernel(%arg0: i32, %arg1: i32, %arg2: memref<16x16xf32, #tpu.memory_space<vmem>>, %arg3: memref<4x4xf32, #tpu.memory_space<smem>>, %arg4: memref<4x1x1xf32, #tpu.memory_space<vmem>>, %arg5: memref<1x4x8x16xf32, #tpu.memory_space<vmem>>, %arg6: memref<1x4x8x16xf32, #tpu.memory_space<vmem>>) attributes {dimension_semantics = [#tpu.dimension_semantics<parallel>, #tpu.dimension_semantics<parallel>], iteration_bounds = array<i64: 2, 1>, scalar_prefetch = 0 : i64, scratch_operands = 0 : i64, tpu.core_type = #tpu.core_type<tc>, window_params = [{pipeline_mode = #tpu.pipeline_mode<synchronous>, transform_indices = @transform_0, window_bounds = array<i64: 16, 16>}, {transform_indices = @transform_1, window_bounds = array<i64: 4, 4>}, {pipeline_mode = #tpu.pipeline_mode<synchronous>, transform_indices = @transform_2, window_bounds = array<i64: 4, 1, 1>}, {transform_indices = @transform_3, window_bounds = array<i64: 1, 4, 8, 16>}, {transform_indices = @transform_4, window_bounds = array<i64: 1, 4, 8, 16>}]} {
    %c0 = arith.constant 0 : index
    %c0_0 = arith.constant 0 : index
    %c0_1 = arith.constant 0 : index
    %c0_2 = arith.constant 0 : index
    %0 = vector.load %arg5[%c0, %c0_0, %c0_1, %c0_2] : memref<1x4x8x16xf32, #tpu.memory_space<vmem>>, vector<1x4x8x16xf32>
    %1 = vector.shape_cast %0 : vector<1x4x8x16xf32> to vector<4x8x16xf32>
    %2 = vector.shape_cast %1 : vector<4x8x16xf32> to vector<32x16xf32>
    %c0_3 = arith.constant 0 : index
    %c0_4 = arith.constant 0 : index
    %3 = vector.load %arg2[%c0_3, %c0_4] : memref<16x16xf32, #tpu.memory_space<vmem>>, vector<16x16xf32>
    %cst = arith.constant dense<0.000000e+00> : vector<32x16xf32>
    %4 = tpu.matmul %2, %3, %cst {dimension_numbers = #tpu.dot_dimension_numbers<[1], [0], [0], [1], [0, 0, 1, 1], [], []>} : vector<32x16xf32>, vector<16x16xf32>, vector<32x16xf32> -> vector<32x16xf32>
    %5 = vector.shape_cast %4 : vector<32x16xf32> to vector<4x8x16xf32>
    %c0_5 = arith.constant 0 : index
    %c0_6 = arith.constant 0 : index
    %c0_7 = arith.constant 0 : index
    %6 = vector.load %arg4[%c0_5, %c0_6, %c0_7] : memref<4x1x1xf32, #tpu.memory_space<vmem>>, vector<4x1x1xf32>
    %7 = vector.extract_strided_slice %1 {offsets = [0, 0, 0], sizes = [1, 8, 16], strides = [1, 1, 1]} : vector<4x8x16xf32> to vector<1x8x16xf32>
    %8 = vector.shape_cast %7 : vector<1x8x16xf32> to vector<8x16xf32>
    %9 = vector.extract_strided_slice %6 {offsets = [0, 0, 0], sizes = [1, 1, 1], strides = [1, 1, 1]} : vector<4x1x1xf32> to vector<1x1x1xf32>
    %10 = vector.shape_cast %9 : vector<1x1x1xf32> to vector<1x1xf32>
    %11 = vector.broadcast %10 : vector<1x1xf32> to vector<8x16xf32>
    %12 = arith.addf %8, %11 : vector<8x16xf32>
    %c0_8 = arith.constant 0 : index
    %c0_9 = arith.constant 0 : index
    %13 = memref.load %arg3[%c0_8, %c0_9] : memref<4x4xf32, #tpu.memory_space<smem>>
    %14 = vector.extract_strided_slice %5 {offsets = [0, 0, 0], sizes = [1, 8, 16], strides = [1, 1, 1]} : vector<4x8x16xf32> to vector<1x8x16xf32>
    %15 = vector.shape_cast %14 : vector<1x8x16xf32> to vector<8x16xf32>
    %16 = vector.broadcast %13 : f32 to vector<8x16xf32>
    %17 = arith.mulf %16, %15 : vector<8x16xf32>
    %18 = arith.addf %12, %17 : vector<8x16xf32>
    %c0_10 = arith.constant 0 : index
    %c1 = arith.constant 1 : index
    %19 = memref.load %arg3[%c0_10, %c1] : memref<4x4xf32, #tpu.memory_space<smem>>
    %20 = vector.extract_strided_slice %5 {offsets = [1, 0, 0], sizes = [1, 8, 16], strides = [1, 1, 1]} : vector<4x8x16xf32> to vector<1x8x16xf32>
    %21 = vector.shape_cast %20 : vector<1x8x16xf32> to vector<8x16xf32>
    %22 = vector.broadcast %19 : f32 to vector<8x16xf32>
    %23 = arith.mulf %22, %21 : vector<8x16xf32>
    %24 = arith.addf %18, %23 : vector<8x16xf32>
    %c0_11 = arith.constant 0 : index
    %c2 = arith.constant 2 : index
    %25 = memref.load %arg3[%c0_11, %c2] : memref<4x4xf32, #tpu.memory_space<smem>>
    %26 = vector.extract_strided_slice %5 {offsets = [2, 0, 0], sizes = [1, 8, 16], strides = [1, 1, 1]} : vector<4x8x16xf32> to vector<1x8x16xf32>
    %27 = vector.shape_cast %26 : vector<1x8x16xf32> to vector<8x16xf32>
    %28 = vector.broadcast %25 : f32 to vector<8x16xf32>
    %29 = arith.mulf %28, %27 : vector<8x16xf32>
    %30 = arith.addf %24, %29 : vector<8x16xf32>
    %c0_12 = arith.constant 0 : index
    %c3 = arith.constant 3 : index
    %31 = memref.load %arg3[%c0_12, %c3] : memref<4x4xf32, #tpu.memory_space<smem>>
    %32 = vector.extract_strided_slice %5 {offsets = [3, 0, 0], sizes = [1, 8, 16], strides = [1, 1, 1]} : vector<4x8x16xf32> to vector<1x8x16xf32>
    %33 = vector.shape_cast %32 : vector<1x8x16xf32> to vector<8x16xf32>
    %34 = vector.broadcast %31 : f32 to vector<8x16xf32>
    %35 = arith.mulf %34, %33 : vector<8x16xf32>
    %36 = arith.addf %30, %35 : vector<8x16xf32>
    %cst_13 = arith.constant 0.000000e+00 : f32
    %37 = vector.broadcast %cst_13 : f32 to vector<8x16xf32>
    %38 = arith.maximumf %36, %37 : vector<8x16xf32>
    %c0_14 = arith.constant 0 : index
    %c0_15 = arith.constant 0 : index
    %c0_16 = arith.constant 0 : index
    %c0_17 = arith.constant 0 : index
    %39 = vector.load %arg6[%c0_14, %c0_15, %c0_16, %c0_17] : memref<1x4x8x16xf32, #tpu.memory_space<vmem>>, vector<1x1x8x16xf32>
    %40 = vector.shape_cast %39 : vector<1x1x8x16xf32> to vector<8x16xf32>
    %41 = vector.shape_cast %38 : vector<8x16xf32> to vector<1x1x8x16xf32>
    tpu.vector_store %arg6[%c0_14, %c0_15, %c0_16, %c0_17], %41 {strides = array<i32>} : memref<1x4x8x16xf32, #tpu.memory_space<vmem>>, vector<1x1x8x16xf32>,
    %42 = vector.extract_strided_slice %1 {offsets = [1, 0, 0], sizes = [1, 8, 16], strides = [1, 1, 1]} : vector<4x8x16xf32> to vector<1x8x16xf32>
    %43 = vector.shape_cast %42 : vector<1x8x16xf32> to vector<8x16xf32>
    %44 = vector.extract_strided_slice %6 {offsets = [1, 0, 0], sizes = [1, 1, 1], strides = [1, 1, 1]} : vector<4x1x1xf32> to vector<1x1x1xf32>
    %45 = vector.shape_cast %44 : vector<1x1x1xf32> to vector<1x1xf32>
    %46 = vector.broadcast %45 : vector<1x1xf32> to vector<8x16xf32>
    %47 = arith.addf %43, %46 : vector<8x16xf32>
    %c1_18 = arith.constant 1 : index
    %c0_19 = arith.constant 0 : index
    %48 = memref.load %arg3[%c1_18, %c0_19] : memref<4x4xf32, #tpu.memory_space<smem>>
    %49 = vector.extract_strided_slice %5 {offsets = [0, 0, 0], sizes = [1, 8, 16], strides = [1, 1, 1]} : vector<4x8x16xf32> to vector<1x8x16xf32>
    %50 = vector.shape_cast %49 : vector<1x8x16xf32> to vector<8x16xf32>
    %51 = vector.broadcast %48 : f32 to vector<8x16xf32>
    %52 = arith.mulf %51, %50 : vector<8x16xf32>
    %53 = arith.addf %47, %52 : vector<8x16xf32>
    %c1_20 = arith.constant 1 : index
    %c1_21 = arith.constant 1 : index
    %54 = memref.load %arg3[%c1_20, %c1_21] : memref<4x4xf32, #tpu.memory_space<smem>>
    %55 = vector.extract_strided_slice %5 {offsets = [1, 0, 0], sizes = [1, 8, 16], strides = [1, 1, 1]} : vector<4x8x16xf32> to vector<1x8x16xf32>
    %56 = vector.shape_cast %55 : vector<1x8x16xf32> to vector<8x16xf32>
    %57 = vector.broadcast %54 : f32 to vector<8x16xf32>
    %58 = arith.mulf %57, %56 : vector<8x16xf32>
    %59 = arith.addf %53, %58 : vector<8x16xf32>
    %c1_22 = arith.constant 1 : index
    %c2_23 = arith.constant 2 : index
    %60 = memref.load %arg3[%c1_22, %c2_23] : memref<4x4xf32, #tpu.memory_space<smem>>
    %61 = vector.extract_strided_slice %5 {offsets = [2, 0, 0], sizes = [1, 8, 16], strides = [1, 1, 1]} : vector<4x8x16xf32> to vector<1x8x16xf32>
    %62 = vector.shape_cast %61 : vector<1x8x16xf32> to vector<8x16xf32>
    %63 = vector.broadcast %60 : f32 to vector<8x16xf32>
    %64 = arith.mulf %63, %62 : vector<8x16xf32>
    %65 = arith.addf %59, %64 : vector<8x16xf32>
    %c1_24 = arith.constant 1 : index
    %c3_25 = arith.constant 3 : index
    %66 = memref.load %arg3[%c1_24, %c3_25] : memref<4x4xf32, #tpu.memory_space<smem>>
    %67 = vector.extract_strided_slice %5 {offsets = [3, 0, 0], sizes = [1, 8, 16], strides = [1, 1, 1]} : vector<4x8x16xf32> to vector<1x8x16xf32>
    %68 = vector.shape_cast %67 : vector<1x8x16xf32> to vector<8x16xf32>
    %69 = vector.broadcast %66 : f32 to vector<8x16xf32>
    %70 = arith.mulf %69, %68 : vector<8x16xf32>
    %71 = arith.addf %65, %70 : vector<8x16xf32>
    %cst_26 = arith.constant 0.000000e+00 : f32
    %72 = vector.broadcast %cst_26 : f32 to vector<8x16xf32>
    %73 = arith.maximumf %71, %72 : vector<8x16xf32>
    %c0_27 = arith.constant 0 : index
    %c1_28 = arith.constant 1 : index
    %c0_29 = arith.constant 0 : index
    %c0_30 = arith.constant 0 : index
    %74 = vector.load %arg6[%c0_27, %c1_28, %c0_29, %c0_30] : memref<1x4x8x16xf32, #tpu.memory_space<vmem>>, vector<1x1x8x16xf32>
    %75 = vector.shape_cast %74 : vector<1x1x8x16xf32> to vector<8x16xf32>
    %76 = vector.shape_cast %73 : vector<8x16xf32> to vector<1x1x8x16xf32>
    tpu.vector_store %arg6[%c0_27, %c1_28, %c0_29, %c0_30], %76 {strides = array<i32>} : memref<1x4x8x16xf32, #tpu.memory_space<vmem>>, vector<1x1x8x16xf32>,
    %77 = vector.extract_strided_slice %1 {offsets = [2, 0, 0], sizes = [1, 8, 16], strides = [1, 1, 1]} : vector<4x8x16xf32> to vector<1x8x16xf32>
    %78 = vector.shape_cast %77 : vector<1x8x16xf32> to vector<8x16xf32>
    %79 = vector.extract_strided_slice %6 {offsets = [2, 0, 0], sizes = [1, 1, 1], strides = [1, 1, 1]} : vector<4x1x1xf32> to vector<1x1x1xf32>
    %80 = vector.shape_cast %79 : vector<1x1x1xf32> to vector<1x1xf32>
    %81 = vector.broadcast %80 : vector<1x1xf32> to vector<8x16xf32>
    %82 = arith.addf %78, %81 : vector<8x16xf32>
    %c2_31 = arith.constant 2 : index
    %c0_32 = arith.constant 0 : index
    %83 = memref.load %arg3[%c2_31, %c0_32] : memref<4x4xf32, #tpu.memory_space<smem>>
    %84 = vector.extract_strided_slice %5 {offsets = [0, 0, 0], sizes = [1, 8, 16], strides = [1, 1, 1]} : vector<4x8x16xf32> to vector<1x8x16xf32>
    %85 = vector.shape_cast %84 : vector<1x8x16xf32> to vector<8x16xf32>
    %86 = vector.broadcast %83 : f32 to vector<8x16xf32>
    %87 = arith.mulf %86, %85 : vector<8x16xf32>
    %88 = arith.addf %82, %87 : vector<8x16xf32>
    %c2_33 = arith.constant 2 : index
    %c1_34 = arith.constant 1 : index
    %89 = memref.load %arg3[%c2_33, %c1_34] : memref<4x4xf32, #tpu.memory_space<smem>>
    %90 = vector.extract_strided_slice %5 {offsets = [1, 0, 0], sizes = [1, 8, 16], strides = [1, 1, 1]} : vector<4x8x16xf32> to vector<1x8x16xf32>
    %91 = vector.shape_cast %90 : vector<1x8x16xf32> to vector<8x16xf32>
    %92 = vector.broadcast %89 : f32 to vector<8x16xf32>
    %93 = arith.mulf %92, %91 : vector<8x16xf32>
    %94 = arith.addf %88, %93 : vector<8x16xf32>
    %c2_35 = arith.constant 2 : index
    %c2_36 = arith.constant 2 : index
    %95 = memref.load %arg3[%c2_35, %c2_36] : memref<4x4xf32, #tpu.memory_space<smem>>
    %96 = vector.extract_strided_slice %5 {offsets = [2, 0, 0], sizes = [1, 8, 16], strides = [1, 1, 1]} : vector<4x8x16xf32> to vector<1x8x16xf32>
    %97 = vector.shape_cast %96 : vector<1x8x16xf32> to vector<8x16xf32>
    %98 = vector.broadcast %95 : f32 to vector<8x16xf32>
    %99 = arith.mulf %98, %97 : vector<8x16xf32>
    %100 = arith.addf %94, %99 : vector<8x16xf32>
    %c2_37 = arith.constant 2 : index
    %c3_38 = arith.constant 3 : index
    %101 = memref.load %arg3[%c2_37, %c3_38] : memref<4x4xf32, #tpu.memory_space<smem>>
    %102 = vector.extract_strided_slice %5 {offsets = [3, 0, 0], sizes = [1, 8, 16], strides = [1, 1, 1]} : vector<4x8x16xf32> to vector<1x8x16xf32>
    %103 = vector.shape_cast %102 : vector<1x8x16xf32> to vector<8x16xf32>
    %104 = vector.broadcast %101 : f32 to vector<8x16xf32>
    %105 = arith.mulf %104, %103 : vector<8x16xf32>
    %106 = arith.addf %100, %105 : vector<8x16xf32>
    %cst_39 = arith.constant 0.000000e+00 : f32
    %107 = vector.broadcast %cst_39 : f32 to vector<8x16xf32>
    %108 = arith.maximumf %106, %107 : vector<8x16xf32>
    %c0_40 = arith.constant 0 : index
    %c2_41 = arith.constant 2 : index
    %c0_42 = arith.constant 0 : index
    %c0_43 = arith.constant 0 : index
    %109 = vector.load %arg6[%c0_40, %c2_41, %c0_42, %c0_43] : memref<1x4x8x16xf32, #tpu.memory_space<vmem>>, vector<1x1x8x16xf32>
    %110 = vector.shape_cast %109 : vector<1x1x8x16xf32> to vector<8x16xf32>
    %111 = vector.shape_cast %108 : vector<8x16xf32> to vector<1x1x8x16xf32>
    tpu.vector_store %arg6[%c0_40, %c2_41, %c0_42, %c0_43], %111 {strides = array<i32>} : memref<1x4x8x16xf32, #tpu.memory_space<vmem>>, vector<1x1x8x16xf32>,
    %112 = vector.extract_strided_slice %1 {offsets = [3, 0, 0], sizes = [1, 8, 16], strides = [1, 1, 1]} : vector<4x8x16xf32> to vector<1x8x16xf32>
    %113 = vector.shape_cast %112 : vector<1x8x16xf32> to vector<8x16xf32>
    %114 = vector.extract_strided_slice %6 {offsets = [3, 0, 0], sizes = [1, 1, 1], strides = [1, 1, 1]} : vector<4x1x1xf32> to vector<1x1x1xf32>
    %115 = vector.shape_cast %114 : vector<1x1x1xf32> to vector<1x1xf32>
    %116 = vector.broadcast %115 : vector<1x1xf32> to vector<8x16xf32>
    %117 = arith.addf %113, %116 : vector<8x16xf32>
    %c3_44 = arith.constant 3 : index
    %c0_45 = arith.constant 0 : index
    %118 = memref.load %arg3[%c3_44, %c0_45] : memref<4x4xf32, #tpu.memory_space<smem>>
    %119 = vector.extract_strided_slice %5 {offsets = [0, 0, 0], sizes = [1, 8, 16], strides = [1, 1, 1]} : vector<4x8x16xf32> to vector<1x8x16xf32>
    %120 = vector.shape_cast %119 : vector<1x8x16xf32> to vector<8x16xf32>
    %121 = vector.broadcast %118 : f32 to vector<8x16xf32>
    %122 = arith.mulf %121, %120 : vector<8x16xf32>
    %123 = arith.addf %117, %122 : vector<8x16xf32>
    %c3_46 = arith.constant 3 : index
    %c1_47 = arith.constant 1 : index
    %124 = memref.load %arg3[%c3_46, %c1_47] : memref<4x4xf32, #tpu.memory_space<smem>>
    %125 = vector.extract_strided_slice %5 {offsets = [1, 0, 0], sizes = [1, 8, 16], strides = [1, 1, 1]} : vector<4x8x16xf32> to vector<1x8x16xf32>
    %126 = vector.shape_cast %125 : vector<1x8x16xf32> to vector<8x16xf32>
    %127 = vector.broadcast %124 : f32 to vector<8x16xf32>
    %128 = arith.mulf %127, %126 : vector<8x16xf32>
    %129 = arith.addf %123, %128 : vector<8x16xf32>
    %c3_48 = arith.constant 3 : index
    %c2_49 = arith.constant 2 : index
    %130 = memref.load %arg3[%c3_48, %c2_49] : memref<4x4xf32, #tpu.memory_space<smem>>
    %131 = vector.extract_strided_slice %5 {offsets = [2, 0, 0], sizes = [1, 8, 16], strides = [1, 1, 1]} : vector<4x8x16xf32> to vector<1x8x16xf32>
    %132 = vector.shape_cast %131 : vector<1x8x16xf32> to vector<8x16xf32>
    %133 = vector.broadcast %130 : f32 to vector<8x16xf32>
    %134 = arith.mulf %133, %132 : vector<8x16xf32>
    %135 = arith.addf %129, %134 : vector<8x16xf32>
    %c3_50 = arith.constant 3 : index
    %c3_51 = arith.constant 3 : index
    %136 = memref.load %arg3[%c3_50, %c3_51] : memref<4x4xf32, #tpu.memory_space<smem>>
    %137 = vector.extract_strided_slice %5 {offsets = [3, 0, 0], sizes = [1, 8, 16], strides = [1, 1, 1]} : vector<4x8x16xf32> to vector<1x8x16xf32>
    %138 = vector.shape_cast %137 : vector<1x8x16xf32> to vector<8x16xf32>
    %139 = vector.broadcast %136 : f32 to vector<8x16xf32>
    %140 = arith.mulf %139, %138 : vector<8x16xf32>
    %141 = arith.addf %135, %140 : vector<8x16xf32>
    %cst_52 = arith.constant 0.000000e+00 : f32
    %142 = vector.broadcast %cst_52 : f32 to vector<8x16xf32>
    %143 = arith.maximumf %141, %142 : vector<8x16xf32>
    %c0_53 = arith.constant 0 : index
    %c3_54 = arith.constant 3 : index
    %c0_55 = arith.constant 0 : index
    %c0_56 = arith.constant 0 : index
    %144 = vector.load %arg6[%c0_53, %c3_54, %c0_55, %c0_56] : memref<1x4x8x16xf32, #tpu.memory_space<vmem>>, vector<1x1x8x16xf32>
    %145 = vector.shape_cast %144 : vector<1x1x8x16xf32> to vector<8x16xf32>
    %146 = vector.shape_cast %143 : vector<8x16xf32> to vector<1x1x8x16xf32>
    tpu.vector_store %arg6[%c0_53, %c3_54, %c0_55, %c0_56], %146 {strides = array<i32>} : memref<1x4x8x16xf32, #tpu.memory_space<vmem>>, vector<1x1x8x16xf32>,
    return
  }
  func.func @transform_0(%arg0: i32, %arg1: i32) -> (i32, i32) {
    %c0_i32 = arith.constant 0 : i32
    %c0_i32_0 = arith.constant 0 : i32
    %c0_i32_1 = arith.constant 0 : i32
    return %c0_i32, %c0_i32_0 : i32, i32
  }
  func.func @transform_1(%arg0: i32, %arg1: i32) -> (i32, i32) {
    %c0_i32 = arith.constant 0 : i32
    %c0_i32_0 = arith.constant 0 : i32
    %c0_i32_1 = arith.constant 0 : i32
    return %c0_i32, %c0_i32_0 : i32, i32
  }
  func.func @transform_2(%arg0: i32, %arg1: i32) -> (i32, i32, i32) {
    %c0_i32 = arith.constant 0 : i32
    %c0_i32_0 = arith.constant 0 : i32
    %c0_i32_1 = arith.constant 0 : i32
    %c0_i32_2 = arith.constant 0 : i32
    return %c0_i32, %c0_i32_0, %c0_i32_1 : i32, i32, i32
  }
  func.func @transform_3(%arg0: i32, %arg1: i32) -> (i32, i32, i32, i32) {
    %c0_i32 = arith.constant 0 : i32
    %c0_i32_0 = arith.constant 0 : i32
    %c0_i32_1 = arith.constant 0 : i32
    return %arg0, %c0_i32, %arg1, %c0_i32_0 : i32, i32, i32, i32
  }
  func.func @transform_4(%arg0: i32, %arg1: i32) -> (i32, i32, i32, i32) {
    %c0_i32 = arith.constant 0 : i32
    %c0_i32_0 = arith.constant 0 : i32
    %c0_i32_1 = arith.constant 0 : i32
    return %arg0, %c0_i32, %arg1, %c0_i32_0 : i32, i32, i32, i32
  }
}

</mosaic_0001>

<llo_original>
// kernel: tpu_custom_call.1
$region0: #{tpu_custom_call.1}
  #allocation0 [shape = 'u32[]', space=smem, size = 0x4, offset = 0x4, fixed_abs, tag = 'smem constant byte address 0x4 - core index']
  #allocation1 [shape = 'u32[144,128]{1,0:T(1,128)}', space=vmem, size = 0x12000, scoped, tag = 'internal scratch']
  %s0 = inlined_call_operand.hbm [shape: f32[16,16], index: 0, kind: input, shape index: {}]
  %s1 = inlined_call_operand.vmem [shape: f32[4,4], index: 1, kind: input, shape index: {}]
  %s2 = inlined_call_operand.vmem [shape: f32[4,1,1], index: 2, kind: input, shape index: {}]
  %s3 = inlined_call_operand.hbm [shape: f32[2,4,8,16], index: 3, kind: input, shape index: {}]
  %s4 = inlined_call_operand.hbm [shape: f32[2,4,8,16], index: 4, kind: output, shape index: {}]
  %s5 = sld [smem:[#allocation0]]
  $region61: #{tpu_custom_call.1} parent=0
    _
  %s7 = ssub.s32 1, %s5
  %s8 = scalar_select 0, %s7, %s5
  $region1: #{tpu_custom_call.1} parent=0
    #allocation2 [shape = 'u8[8192]{0}', space=vmem, size = 0x2000, scoped, tag = 'input window, operand 0, single buffered']
    #allocation3 [shape = 's32[2]{0}', space=sflag, size = 0x8, scoped, tag = 'scoped memory for tpu_custom_call.1']
    #allocation4 [shape = 's32[2]{0}', space=sflag, size = 0x8, scoped, tag = 'scoped memory for tpu_custom_call.1']
    #allocation5 [shape = 's32[2]{0}', space=sflag, size = 0x8, scoped, tag = 'scoped memory for tpu_custom_call.1']
    #allocation6 [shape = 'u8[2048]{0}', space=smem, size = 0x800, scoped, tag = 'input window, operand 1, single buffered']
    #allocation7 [shape = 'u8[32768]{0}', space=vmem, size = 0x8000, scoped, tag = 'input window, operand 3']
    #allocation8 [shape = 's32[2]{0}', space=sflag, size = 0x8, scoped, tag = 'scoped memory for tpu_custom_call.1']
    #allocation9 [shape = 'u8[32768]{0}', space=vmem, size = 0x8000, scoped, tag = 'output window, operand 0']
    %9 = vsyncpa [#allocation3], 0
    %10 = vsyncpa [#allocation5], 0
    %11 = vsyncpa [#allocation8], 0
    %s12 = scalar_lea.sflag [#allocation8], 1
    %13 = vsyncpa %s12, 0
    %14 = vsyncpa [#allocation4], 0
    %s15 = scalar_lea.sflag [#allocation4], 1
    %16 = vsyncpa %s15, 0
    loop: start=0, step=1, limit=4
    $region2: #{tpu_custom_call.1} parent=1 // loop_pre_header
      _
    $region3: #{tpu_custom_call.1} parent=1 // loop_header
      %s18 = sphi 0, %s22
      %p19 = scmp.ge.s32.totalorder %s18, 4
      %s25 = sphi 0, %s37
      %s26 = sphi 0, %s33
      %s27 = sphi 0, %s25
      %s28 = sphi 0, %s26
      %s29 = sphi 0, %s27
      %s30 = sphi 0, %s28
      %s38 = sphi 0, %s38
      %s40 = sphi 0, %s38
      %s41 = sphi 0, %s40
      %s55 = sphi 0, %s41
      %s59 = sphi 0, %s59
      %s61 = sphi 0, %s59
      %s62 = sphi 0, %s61
      %s76 = sphi 0, %s62
      %s80 = sphi 0, %s80
      %s82 = sphi 0, %s80
      %s83 = sphi 0, %s82
      %s97 = sphi 0, %s83
      %s105 = sphi 0, %s107
      %s108 = sphi 0, %s105
      %s109 = sphi 0, %s108
      %s125 = sphi 0, %s109
      %s133 = sphi 0, %s135
      %s136 = sphi 0, %s133
      %s137 = sphi 0, %s136
      %s153 = sphi 0, %s137
    $region4: #{tpu_custom_call.1} parent=1 // loop_header_branch
      %21 = sbr.rel (%p19) target = $region8
    $region5: #{tpu_custom_call.1} parent=1 // loop_body
      %s23 = ssub.s32 %s18, 1
      %s24 = ssub.s32 %s18, 2
      %s31 = sadd.s32 1, %s26
      %p32 = scmp.ge.s32.totalorder %s31, 1
      %s33 = scalar_select %p32, 0, %s31
      %s34 = sadd.s32 1, %s25
      %s35 = scalar_select %p32, %s34, %s25
      %p36 = scmp.ge.s32.totalorder %s35, 2
      %s37 = scalar_select %p36, 0, %s35
      %s39 = sadd.s32 %s38, 1
      %p42 = scmp.eq.s32.totalorder %s18, 1
      %p43 = scmp.ne.s32.totalorder %s38, %s40
      %p44 = scmp.eq.s32.totalorder %s18, 0
      %p45 = por %p43, %p44
      %p46 = scmp.ne.s32.totalorder %s38, %s40
      %p47 = scmp.eq.s32.totalorder %s23, 1
      %p48 = por %p46, %p47
      %p49 = scmp.ne.s32.totalorder %s40, %s41
      %p50 = scmp.eq.s32.totalorder %s23, 0
      %p51 = por %p49, %p50
      %p52 = scmp.ne.s32.totalorder %s40, %s41
      %p53 = scmp.eq.s32.totalorder %s24, 1
      %p54 = por %p52, %p53
      %p56 = scmp.ne.s32.totalorder %s41, %s55
      %p57 = scmp.eq.s32.totalorder %s24, 0
      %p58 = por %p56, %p57
      %s60 = sadd.s32 %s59, 1
      %p63 = scmp.eq.s32.totalorder %s18, 1
      %p64 = scmp.ne.s32.totalorder %s59, %s61
      %p65 = scmp.eq.s32.totalorder %s18, 0
      %p66 = por %p64, %p65
      %p67 = scmp.ne.s32.totalorder %s59, %s61
      %p68 = scmp.eq.s32.totalorder %s23, 1
      %p69 = por %p67, %p68
      %p70 = scmp.ne.s32.totalorder %s61, %s62
      %p71 = scmp.eq.s32.totalorder %s23, 0
      %p72 = por %p70, %p71
      %p73 = scmp.ne.s32.totalorder %s61, %s62
      %p74 = scmp.eq.s32.totalorder %s24, 1
      %p75 = por %p73, %p74
      %p77 = scmp.ne.s32.totalorder %s62, %s76
      %p78 = scmp.eq.s32.totalorder %s24, 0
      %p79 = por %p77, %p78
      %s81 = sadd.s32 %s80, 1
      %p84 = scmp.eq.s32.totalorder %s18, 1
      %p85 = scmp.ne.s32.totalorder %s80, %s82
      %p86 = scmp.eq.s32.totalorder %s18, 0
      %p87 = por %p85, %p86
      %p88 = scmp.ne.s32.totalorder %s80, %s82
      %p89 = scmp.eq.s32.totalorder %s23, 1
      %p90 = por %p88, %p89
      %p91 = scmp.ne.s32.totalorder %s82, %s83
      %p92 = scmp.eq.s32.totalorder %s23, 0
      %p93 = por %p91, %p92
      %p94 = scmp.ne.s32.totalorder %s82, %s83
      %p95 = scmp.eq.s32.totalorder %s24, 1
      %p96 = por %p94, %p95
      %p98 = scmp.ne.s32.totalorder %s83, %s97
      %p99 = scmp.eq.s32.totalorder %s24, 0
      %p100 = por %p98, %p99
      %s101 = ssub.s32 %s25, %s37
      %s102 = ssub.s32 %s26, %s33
      %s103 = sor.u32 %s101, %s102
      %p104 = scmp.eq.s32.totalorder %s103, 0
      %s106 = sadd.s32 %s105, 1
      %s107 = scalar_select %p104, %s105, %s106
      %p110 = pneg %p104
      %p111 = scmp.eq.s32.totalorder %s18, 1
      %p112 = por %p110, %p111
      %p113 = scmp.ne.s32.totalorder %s105, %s108
      %p114 = scmp.eq.s32.totalorder %s18, 0
      %p115 = por %p113, %p114
      %p116 = scmp.ne.s32.totalorder %s105, %s108
      %p117 = scmp.eq.s32.totalorder %s23, 1
      %p118 = por %p116, %p117
      %p119 = scmp.ne.s32.totalorder %s108, %s109
      %p120 = scmp.eq.s32.totalorder %s23, 0
      %p121 = por %p119, %p120
      %p122 = scmp.ne.s32.totalorder %s108, %s109
      %p123 = scmp.eq.s32.totalorder %s24, 1
      %p124 = por %p122, %p123
      %p126 = scmp.ne.s32.totalorder %s109, %s125
      %p127 = scmp.eq.s32.totalorder %s24, 0
      %p128 = por %p126, %p127
      %s129 = ssub.s32 %s25, %s37
      %s130 = ssub.s32 %s26, %s33
      %s131 = sor.u32 %s129, %s130
      %p132 = scmp.eq.s32.totalorder %s131, 0
      %s134 = sadd.s32 %s133, 1
      %s135 = scalar_select %p132, %s133, %s134
      %p138 = pneg %p132
      %p139 = scmp.eq.s32.totalorder %s18, 1
      %p140 = por %p138, %p139
      %p141 = scmp.ne.s32.totalorder %s133, %s136
      %p142 = scmp.eq.s32.totalorder %s18, 0
      %p143 = por %p141, %p142
      %p144 = scmp.ne.s32.totalorder %s133, %s136
      %p145 = scmp.eq.s32.totalorder %s23, 1
      %p146 = por %p144, %p145
      %p147 = scmp.ne.s32.totalorder %s136, %s137
      %p148 = scmp.eq.s32.totalorder %s23, 0
      %p149 = por %p147, %p148
      %p150 = scmp.ne.s32.totalorder %s136, %s137
      %p151 = scmp.eq.s32.totalorder %s24, 1
      %p152 = por %p150, %p151
      %p154 = scmp.ne.s32.totalorder %s137, %s153
      %p155 = scmp.eq.s32.totalorder %s24, 0
      %p156 = por %p154, %p155
      %p157 = scmp.le.s32.totalorder 1, %s18
      %p158 = scmp.lt.s32.totalorder %s18, 3
      %p159 = pnand %p157, %p158
      %p160 = pneg %p159
      // Predicated region
      $region9: #{tpu_custom_call.1} parent=5 // pred_check
        _
      $region10: #{tpu_custom_call.1} parent=5 // pred_check_branch
        %162 = sbr.rel (%p159) target = $region12
      $region11: #{tpu_custom_call.1} parent=5 // pred_region
        %s163 = ssub.s32 %s18, 1
        // Predicated region
        $region13: #{tpu_custom_call.1} parent=11 // pred_check
          %p164 = pneg %p51
        $region14: #{tpu_custom_call.1} parent=11 // pred_check_branch
          %166 = sbr.rel (%p164) target = $region16
        $region15: #{tpu_custom_call.1} parent=11 // pred_region
          %s168 = ssub.s32 256, 256
          %169 = vsyncadd [#allocation3], %s168
          %s170 = sshll.u32 [#allocation2], 4
          %s171 = int_to_ptr.vmem [resolvable:$true] %s170
          %176 = dma.hbm_to_vmem [thread:$0]  %s0, 256, %s171, [#allocation3], 128, 128, 8
        $region16: #{tpu_custom_call.1} parent=11 // pred_fallthru
          _
        // Predicated region
        $region17: #{tpu_custom_call.1} parent=11 // pred_check
          %p177 = pneg %p72
        $region18: #{tpu_custom_call.1} parent=11 // pred_check_branch
          %179 = sbr.rel (%p177) target = $region20
        $region19: #{tpu_custom_call.1} parent=11 // pred_region
          %s181 = ssub.s32 64, 64
          %182 = vsyncadd [#allocation5], %s181
          %s184 = sshll.u32 %s1, 4
          %s185 = int_to_ptr.vmem [resolvable:$true] %s184
          %187 = dma.vmem_to_smem %s185, 64, [#allocation6], [#allocation5]
        $region20: #{tpu_custom_call.1} parent=11 // pred_fallthru
          _
        // Predicated region
        $region21: #{tpu_custom_call.1} parent=11 // pred_check
          %p188 = pneg %p93
        $region22: #{tpu_custom_call.1} parent=11 // pred_check_branch
          %190 = sbr.rel (%p188) target = $region24
        $region23: #{tpu_custom_call.1} parent=11 // pred_region
          _
        $region24: #{tpu_custom_call.1} parent=11 // pred_fallthru
          _
      $region12: #{tpu_custom_call.1} parent=5 // pred_fallthru
        _
      %p191 = scmp.lt.s32.totalorder %s18, 2
      // Predicated region
      $region25: #{tpu_custom_call.1} parent=5 // pred_check
        %p192 = pneg %p191
      $region26: #{tpu_custom_call.1} parent=5 // pred_check_branch
        %194 = sbr.rel (%p192) target = $region28
      $region27: #{tpu_custom_call.1} parent=5 // pred_region
        // Predicated region
        $region29: #{tpu_custom_call.1} parent=27 // pred_check
          %p195 = pneg %p115
        $region30: #{tpu_custom_call.1} parent=27 // pred_check_branch
          %197 = sbr.rel (%p195) target = $region32
        $region31: #{tpu_custom_call.1} parent=27 // pred_region
          %s198 = sand.u32 %s105, 1
          %s199 = scalar_lea.sflag [#allocation8], %s198
          %s200 = sand.u32 %s105, 1
          %s201 = smul.addr %s200, 32
          %s202 = scalar_lea.vmem [#allocation7], %s201
          %s204 = ssub.s32 512, 512
          %205 = vsyncadd %s199, %s204
          %s206 = smul.addr %s25, 4
          %s207 = sadd.s32 %s26, %s206
          %s208 = smul.addr %s207, 128
          %s209 = scalar_lea.hbm %s3, %s208
          %s210 = sshll.u32 %s202, 4
          %s211 = int_to_ptr.vmem [resolvable:$true] %s210
          %216 = dma.hbm_to_vmem [thread:$0]  %s209, 512, %s211, %s199, 128, 128, 8
        $region32: #{tpu_custom_call.1} parent=27 // pred_fallthru
          _
      $region28: #{tpu_custom_call.1} parent=5 // pred_fallthru
        _
      %p217 = scmp.le.s32.totalorder 1, %s18
      %p218 = scmp.lt.s32.totalorder %s18, 3
      %p219 = pnand %p217, %p218
      %p220 = pneg %p219
      // Predicated region
      $region33: #{tpu_custom_call.1} parent=5 // pred_check
        _
      $region34: #{tpu_custom_call.1} parent=5 // pred_check_branch
        %222 = sbr.rel (%p219) target = $region36
      $region35: #{tpu_custom_call.1} parent=5 // pred_region
        %s223 = ssub.s32 %s18, 1
        // Predicated region
        $region37: #{tpu_custom_call.1} parent=35 // pred_check
          %p224 = pneg %p51
        $region38: #{tpu_custom_call.1} parent=35 // pred_check_branch
          %226 = sbr.rel (%p224) target = $region40
        $region39: #{tpu_custom_call.1} parent=35 // pred_region
          %227 = dma.done [#allocation3], 256
        $region40: #{tpu_custom_call.1} parent=35 // pred_fallthru
          _
        // Predicated region
        $region41: #{tpu_custom_call.1} parent=35 // pred_check
          %p228 = pneg %p72
        $region42: #{tpu_custom_call.1} parent=35 // pred_check_branch
          %230 = sbr.rel (%p228) target = $region44
        $region43: #{tpu_custom_call.1} parent=35 // pred_region
          %231 = dma.done [#allocation5], 64
        $region44: #{tpu_custom_call.1} parent=35 // pred_fallthru
          _
        %s232 = sand.u32 %s108, 1
        %s233 = scalar_lea.sflag [#allocation8], %s232
        %s234 = sand.u32 %s108, 1
        %s235 = smul.addr %s234, 32
        %s236 = scalar_lea.vmem [#allocation7], %s235
        // Predicated region
        $region45: #{tpu_custom_call.1} parent=35 // pred_check
          %p237 = pneg %p121
        $region46: #{tpu_custom_call.1} parent=35 // pred_check_branch
          %239 = sbr.rel (%p237) target = $region48
        $region47: #{tpu_custom_call.1} parent=35 // pred_region
          %240 = dma.done %s233, 512
        $region48: #{tpu_custom_call.1} parent=35 // pred_fallthru
          _
        %241 = sfence
        %p242 = pneg %p51
        %p243 = pneg %p48
        %p244 = pneg %p72
        %p245 = pneg %p69
        %p246 = pneg %p93
        %p247 = pneg %p90
        %s248 = sand.u32 %s108, 1
        %s249 = scalar_lea.sflag [#allocation8], %s248
        %s250 = sand.u32 %s108, 1
        %s251 = smul.addr %s250, 32
        %s252 = scalar_lea.vmem [#allocation7], %s251
        %p253 = pneg %p121
        %p254 = pneg %p118
        %p255 = pneg %p149
        %p256 = pneg %p146
        %s257 = sand.u32 %s136, 1
        %s258 = scalar_lea.sflag [#allocation4], %s257
        %s259 = sand.u32 %s136, 1
        %s260 = smul.addr %s259, 32
        %s261 = scalar_lea.vmem [#allocation9], %s260
        %v262 = vld [vmem:[%s236] sm:$0xff]
        %v263 = vld [vmem:[%s236 + $0x8] sm:$0xff]
        %v264 = vld [vmem:[%s236 + $0x10] sm:$0xff]
        %v265 = vld [vmem:[%s236 + $0x18] sm:$0xff]
        %v266 = vld [vmem:[#allocation2] sm:$0xff]
        %v267 = vld [vmem:[#allocation2 + $0x8] sm:$0xff]
        %vm268 = vcmask 130048
        %v270 = vsel %vm268, %v262, 0
        %v273 = vsel %vm268, %v263, 0
        %v276 = vsel %vm268, %v264, 0
        %v279 = vsel %vm268, %v265, 0
        %281 = vmatprep.subr.mxu0 0.0
        %282 = vmatpush1.msra.mxu0 %v266
        %283 = vmatprep.subr.mxu0 0.0
        %284 = vmatpush1.msra.mxu0 %v267
        %285 = vmatprep.subr.mxu0 0.0
        %286 = vmatpush1.msra.mxu0 0.0
        %287 = vmatprep.subr.mxu0 0.0
        %288 = vmatpush1.msra.mxu0 0.0
        %289 = vmatprep.subr.mxu0 0.0
        %290 = vmatpush1.msra.mxu0 0.0
        %291 = vmatprep.subr.mxu0 0.0
        %292 = vmatpush1.msra.mxu0 0.0
        %293 = vmatprep.subr.mxu0 0.0
        %294 = vmatpush1.msra.mxu0 0.0
        %295 = vmatprep.subr.mxu0 0.0
        %296 = vmatpush1.msra.mxu0 0.0
        %297 = vmatprep.subr.mxu0 0.0
        %298 = vmatpush1.msra.mxu0 0.0
        %299 = vmatprep.subr.mxu0 0.0
        %300 = vmatpush1.msra.mxu0 0.0
        %301 = vmatprep.subr.mxu0 0.0
        %302 = vmatpush1.msra.mxu0 0.0
        %303 = vmatprep.subr.mxu0 0.0
        %304 = vmatpush1.msra.mxu0 0.0
        %305 = vmatprep.subr.mxu0 0.0
        %306 = vmatpush1.msra.mxu0 0.0
        %307 = vmatprep.subr.mxu0 0.0
        %308 = vmatpush1.msra.mxu0 0.0
        %309 = vmatprep.subr.mxu0 0.0
        %310 = vmatpush1.msra.mxu0 0.0
        %311 = vmatprep.subr.mxu0 0.0
        %312 = vmatpush1.msra.mxu0 0.0
        %313 = vmatprep.subr.mxu0 0.0
        %314 = vmatpush1.msra.mxu0 0.0
        %315 = vmatprep.subr.mxu0 0.0
        %316 = vmatpush1.msra.mxu0 0.0
        %317 = vmatprep.subr.mxu0 0.0
        %318 = vmatpush1.msra.mxu0 0.0
        %319 = vmatprep.subr.mxu0 0.0
        %320 = vmatpush1.msra.mxu0 0.0
        %321 = vmatprep.subr.mxu0 0.0
        %322 = vmatpush1.msra.mxu0 0.0
        %323 = vmatprep.subr.mxu0 0.0
        %324 = vmatpush1.msra.mxu0 0.0
        %325 = vmatprep.subr.mxu0 0.0
        %326 = vmatpush1.msra.mxu0 0.0
        %327 = vmatprep.subr.mxu0 0.0
        %328 = vmatpush1.msra.mxu0 0.0
        %329 = vmatprep.subr.mxu0 0.0
        %330 = vmatpush1.msra.mxu0 0.0
        %331 = vmatprep.subr.mxu0 0.0
        %332 = vmatpush1.msra.mxu0 0.0
        %333 = vmatprep.subr.mxu0 0.0
        %334 = vmatpush1.msra.mxu0 0.0
        %335 = vmatprep.subr.mxu0 0.0
        %336 = vmatpush1.msra.mxu0 0.0
        %337 = vmatprep.subr.mxu0 0.0
        %338 = vmatpush1.msra.mxu0 0.0
        %339 = vmatprep.subr.mxu0 0.0
        %340 = vmatpush1.msra.mxu0 0.0
        %341 = vmatprep.subr.mxu0 0.0
        %342 = vmatpush1.msra.mxu0 0.0
        %343 = vmatprep.subr.mxu0 0.0
        %344 = vmatpush1.msra.mxu0 0.0
        %345 = vmatprep.mubr.f32.mxu0 0.0
        %346 = vmatmul.mubr.f32.gmra.mrb[0].mxu0 %v270
        %v347 = vpop.f32.mrb[0].mxu0
        %v348 = vadd.f32 0.0, %v347
        %v349 = vpop.f32.mrb[0].mxu0
        %350 = vmatprep.mubr.f32.mxu0 0.0
        %351 = vmatmul.mubr.f32.gmra.mrb[0].mxu0 %v273
        %v352 = vpop.f32.mrb[0].mxu0
        %v353 = vadd.f32 0.0, %v352
        %v354 = vpop.f32.mrb[0].mxu0
        %355 = vmatprep.mubr.f32.mxu0 0.0
        %356 = vmatmul.mubr.f32.gmra.mrb[0].mxu0 %v276
        %v357 = vpop.f32.mrb[0].mxu0
        %v358 = vadd.f32 0.0, %v357
        %v359 = vpop.f32.mrb[0].mxu0
        %360 = vmatprep.mubr.f32.mxu0 0.0
        %361 = vmatmul.mubr.f32.gmra.mrb[0].mxu0 %v279
        %v362 = vpop.f32.mrb[0].mxu0
        %v363 = vadd.f32 0.0, %v362
        %v364 = vpop.f32.mrb[0].mxu0
        %365 = vdwg.mxu0
        %v366 = vld [vmem:[%s2] sm:$0x1]
        %v367 = vld [vmem:[%s2 + $0x1] sm:$0x1]
        %v368 = vld [vmem:[%s2 + $0x2] sm:$0x1]
        %v369 = vld [vmem:[%s2 + $0x3] sm:$0x1]
        %v371 = vlaneseq
        %v372 = vshrl.u32 %v371, 7
        %v373 = vsub.s32 0, %v372
        %v374 = vrot.slane %v366, %v373
        %375 = vset.pattern.permute.xlu0 0
        %376 = vperm.xlu0 %375, %v374
        %v377 = vpop.permute.xlu0 %376
        %v379 = vadd.f32 %v262, %v377
        %s380 = sld [smem:[#allocation6]]
        %v381 = vstv %s380
        %v382 = vmul.f32 %v381, %v348
        %v383 = vadd.f32 %v379, %v382
        %s384 = sld [smem:[#allocation6 + $0x1]]
        %v385 = vstv %s384
        %v386 = vmul.f32 %v385, %v353
        %v387 = vadd.f32 %v383, %v386
        %s388 = sld [smem:[#allocation6 + $0x2]]
        %v389 = vstv %s388
        %v390 = vmul.f32 %v389, %v358
        %v391 = vadd.f32 %v387, %v390
        %s392 = sld [smem:[#allocation6 + $0x3]]
        %v393 = vstv %s392
        %v394 = vmul.f32 %v393, %v363
        %v395 = vadd.f32 %v391, %v394
        %v396 = vmax.f32 %v395, 0.0
        %397 = vst.msk [vmem:[%s261] sm:$0xff] %vm268, %v396
        %v399 = vlaneseq
        %v400 = vshrl.u32 %v399, 7
        %v401 = vsub.s32 0, %v400
        %v402 = vrot.slane %v367, %v401
        %403 = vset.pattern.permute.xlu0 0
        %404 = vperm.xlu0 %403, %v402
        %v405 = vpop.permute.xlu0 %404
        %v407 = vadd.f32 %v263, %v405
        %s408 = sld [smem:[#allocation6 + $0x80]]
        %v409 = vstv %s408
        %v410 = vmul.f32 %v409, %v348
        %v411 = vadd.f32 %v407, %v410
        %s412 = sld [smem:[#allocation6 + $0x81]]
        %v413 = vstv %s412
        %v414 = vmul.f32 %v413, %v353
        %v415 = vadd.f32 %v411, %v414
        %s416 = sld [smem:[#allocation6 + $0x82]]
        %v417 = vstv %s416
        %v418 = vmul.f32 %v417, %v358
        %v419 = vadd.f32 %v415, %v418
        %s420 = sld [smem:[#allocation6 + $0x83]]
        %v421 = vstv %s420
        %v422 = vmul.f32 %v421, %v363
        %v423 = vadd.f32 %v419, %v422
        %v424 = vmax.f32 %v423, 0.0
        %s425 = scalar_lea.vmem %s261, 8 [#allocation9]
        %426 = vst.msk [vmem:[%s425] sm:$0xff] %vm268, %v424
        %v428 = vlaneseq
        %v429 = vshrl.u32 %v428, 7
        %v430 = vsub.s32 0, %v429
        %v431 = vrot.slane %v368, %v430
        %432 = vset.pattern.permute.xlu0 0
        %433 = vperm.xlu0 %432, %v431
        %v434 = vpop.permute.xlu0 %433
        %v436 = vadd.f32 %v264, %v434
        %s437 = sld [smem:[#allocation6 + $0x100]]
        %v438 = vstv %s437
        %v439 = vmul.f32 %v438, %v348
        %v440 = vadd.f32 %v436, %v439
        %s441 = sld [smem:[#allocation6 + $0x101]]
        %v442 = vstv %s441
        %v443 = vmul.f32 %v442, %v353
        %v444 = vadd.f32 %v440, %v443
        %s445 = sld [smem:[#allocation6 + $0x102]]
        %v446 = vstv %s445
        %v447 = vmul.f32 %v446, %v358
        %v448 = vadd.f32 %v444, %v447
        %s449 = sld [smem:[#allocation6 + $0x103]]
        %v450 = vstv %s449
        %v451 = vmul.f32 %v450, %v363
        %v452 = vadd.f32 %v448, %v451
        %v453 = vmax.f32 %v452, 0.0
        %s454 = scalar_lea.vmem %s261, 16 [#allocation9]
        %455 = vst.msk [vmem:[%s454] sm:$0xff] %vm268, %v453
        %v457 = vlaneseq
        %v458 = vshrl.u32 %v457, 7
        %v459 = vsub.s32 0, %v458
        %v460 = vrot.slane %v369, %v459
        %461 = vset.pattern.permute.xlu0 0
        %462 = vperm.xlu0 %461, %v460
        %v463 = vpop.permute.xlu0 %462
        %v465 = vadd.f32 %v265, %v463
        %s466 = sld [smem:[#allocation6 + $0x180]]
        %v467 = vstv %s466
        %v468 = vmul.f32 %v467, %v348
        %v469 = vadd.f32 %v465, %v468
        %s470 = sld [smem:[#allocation6 + $0x181]]
        %v471 = vstv %s470
        %v472 = vmul.f32 %v471, %v353
        %v473 = vadd.f32 %v469, %v472
        %s474 = sld [smem:[#allocation6 + $0x182]]
        %v475 = vstv %s474
        %v476 = vmul.f32 %v475, %v358
        %v477 = vadd.f32 %v473, %v476
        %s478 = sld [smem:[#allocation6 + $0x183]]
        %v479 = vstv %s478
        %v480 = vmul.f32 %v479, %v363
        %v481 = vadd.f32 %v477, %v480
        %v482 = vmax.f32 %v481, 0.0
        %s483 = scalar_lea.vmem %s261, 24 [#allocation9]
        %484 = vst.msk [vmem:[%s483] sm:$0xff] %vm268, %v482
        %s485 = sand.u32 %s136, 1
        %s486 = scalar_lea.sflag [#allocation4], %s485
        %s487 = sand.u32 %s136, 1
        %s488 = smul.addr %s487, 32
        %s489 = scalar_lea.vmem [#allocation9], %s488
        // Predicated region
        $region49: #{tpu_custom_call.1} parent=35 // pred_check
          %p490 = pneg %p146
        $region50: #{tpu_custom_call.1} parent=35 // pred_check_branch
          %492 = sbr.rel (%p490) target = $region52
        $region51: #{tpu_custom_call.1} parent=35 // pred_region
          %s494 = ssub.s32 512, 512
          %495 = vsyncadd %s486, %s494
          %s496 = smul.addr %s27, 4
          %s497 = sadd.s32 %s28, %s496
          %s498 = smul.addr %s497, 128
          %s499 = scalar_lea.hbm %s4, %s498
          %s500 = sshll.u32 %s489, 4
          %s501 = int_to_ptr.vmem [resolvable:$true] %s500
          %506 = dma.vmem_to_hbm [thread:$0]  %s501, 512, %s499, %s486, 128, 128, 8
        $region52: #{tpu_custom_call.1} parent=35 // pred_fallthru
          _
      $region36: #{tpu_custom_call.1} parent=5 // pred_fallthru
        _
      %p507 = scmp.le.s32.totalorder 2, %s18
      // Predicated region
      $region53: #{tpu_custom_call.1} parent=5 // pred_check
        %p508 = pneg %p507
      $region54: #{tpu_custom_call.1} parent=5 // pred_check_branch
        %510 = sbr.rel (%p508) target = $region56
      $region55: #{tpu_custom_call.1} parent=5 // pred_region
        %s511 = ssub.s32 %s18, 2
        // Predicated region
        $region57: #{tpu_custom_call.1} parent=55 // pred_check
          %p512 = pneg %p152
        $region58: #{tpu_custom_call.1} parent=55 // pred_check_branch
          %514 = sbr.rel (%p512) target = $region60
        $region59: #{tpu_custom_call.1} parent=55 // pred_region
          %s515 = sand.u32 %s137, 1
          %s516 = scalar_lea.sflag [#allocation4], %s515
          %s517 = sand.u32 %s137, 1
          %s518 = smul.addr %s517, 32
          %s519 = scalar_lea.vmem [#allocation9], %s518
          %520 = dma.done %s516, 512
        $region60: #{tpu_custom_call.1} parent=55 // pred_fallthru
          _
      $region56: #{tpu_custom_call.1} parent=5 // pred_fallthru
        _
    $region6: #{tpu_custom_call.1} parent=1 // loop_footer
      %s22 = sadd.s32 1, %s18
    $region7: #{tpu_custom_call.1} parent=1 // loop_footer_branch
      %17 = sbr.rel target = $region3
    $region8: #{tpu_custom_call.1} parent=1 // loop_exit
      _
    %521 = vsyncpa [#allocation3], 1
    %s522 = scalar_lea.sflag [#allocation3], 1
    %523 = vsyncpa %s522, 1
    %524 = vsyncpa [#allocation8], 1
    %s525 = scalar_lea.sflag [#allocation8], 1
    %526 = vsyncpa %s525, 1
    %527 = vsyncpa [#allocation4], 1
    %s528 = scalar_lea.sflag [#allocation4], 1
    %529 = vsyncpa %s528, 1
    %530 = vsyncpa [#allocation5], 1
    %s531 = scalar_lea.sflag [#allocation5], 1
    %532 = vsyncpa %s531, 1

</llo_original>
